<compile_context>
chip_gen: v6e
topology: v6e:2x2x1
jax: 0.10.0
libtpu: 0.0.40
codegen_flags: <defaults>
</compile_context>

<pallas_src>
import math

import jax
import jax.numpy as jnp
from jax.experimental import pallas as pl
from jax.experimental.pallas import tpu as pltpu


def _add_pe_kernel(x_ref, pe_ref, o_ref):
    # Same-rank blocks: x/o (1, TR, C), pe (1, TR, C).  Pure VPU broadcast-add over B.
    o_ref[...] = x_ref[...] + pe_ref[...]


def make_pe_table(d_model: int, max_len: int = 5000, dtype=jnp.float32) -> jnp.ndarray:
    """PyTorch pe buffer, built directly in (d_model, max_len) layout (pre-transposed)."""
    position = jnp.arange(0, max_len, dtype=jnp.float32)[None, :]              # (1, max_len)
    div_term = jnp.exp(
        jnp.arange(0, d_model, 2, dtype=jnp.float32) * (-math.log(10000.0) / d_model)
    )[:, None]                                                                  # (d_model/2, 1)
    angles = div_term * position                                                # (d_model/2, max_len)
    pe = jnp.zeros((d_model, max_len), dtype=jnp.float32)
    pe = pe.at[0::2, :].set(jnp.sin(angles))
    pe = pe.at[1::2, :].set(jnp.cos(angles))
    return pe.astype(dtype)


def _choose_tiling(hl: int, itemsize: int, target_block_bytes: int = 2 << 20):
    """Pick a lane-dense (R, C) view of the trailing H*L plane and a row tile TR.

    Returns (R, C, TR) with C a multiple of 128 dividing H*L, and TR either a
    multiple of 8 dividing R or R itself (both layout-legal).  Returns None if
    H*L is not 128-divisible (caller falls back to full (1, H, L) blocks).
    """
    c = 0
    for cand in (1024, 512, 256, 128):
        if hl % cand == 0:
            c = cand
            break
    if c == 0:
        return None
    r = hl // c
    if r <= 8:
        return r, c, r
    target_rows = max(8, target_block_bytes // (c * itemsize))
    tr = r  # fallback: full extent (always layout-legal)
    cand_tr = (min(r, int(target_rows)) // 8) * 8
    while cand_tr >= 8:
        if r % cand_tr == 0:
            tr = cand_tr
            break
        cand_tr -= 8
    return r, c, tr


def positional_encoding_forward(x: jnp.ndarray, pe_hm: jnp.ndarray) -> jnp.ndarray:
    """x: (B, H, L) float; pe_hm: (d_model=H, max_len) table. Returns (B, H, L)."""
    B, H, L = x.shape
    d_model, max_len = pe_hm.shape
    assert d_model == H, "pe table d_model must match x's channel dim"

    # Tile/slice the positional table along the sequence axis (wrap if L > max_len),
    # matching the `repeat ... trunc + 1` + slice in the PyTorch forward.  Cheap, once.
    if L <= max_len:
        pe_hl = jax.lax.slice(pe_hm, (0, 0), (H, L))
    else:
        reps = (L + max_len - 1) // max_len
        pe_hl = jnp.tile(pe_hm, (1, reps))[:, :L]
    pe_hl = pe_hl.astype(x.dtype)

    itemsize = jnp.dtype(x.dtype).itemsize
    hl = H * L
    cost = pl.CostEstimate(
        flops=B * hl,
        transcendentals=0,
        bytes_accessed=(2 * B * hl + hl) * itemsize,
    )

    tiling = _choose_tiling(hl, itemsize)

    if tiling is None:
        # H*L not 128-divisible: one full (1, H, L) block per batch element
        # (block == full trailing dims is always layout-legal).
        vmem_limit = int(min(60 * 1024 * 1024, max(32 * 1024 * 1024, 8 * hl * itemsize)))
        return pl.pallas_call(
            _add_pe_kernel,
            out_shape=jax.ShapeDtypeStruct((B, H, L), x.dtype),
            grid_spec=pltpu.PrefetchScalarGridSpec(
                num_scalar_prefetch=0,
                grid=(B,),
                in_specs=[
                    pl.BlockSpec((1, H, L), lambda b: (b, 0, 0)),
                    pl.BlockSpec((1, H, L), lambda b: (0, 0, 0)),
                ],
                out_specs=pl.BlockSpec((1, H, L), lambda b: (b, 0, 0)),
            ),
            compiler_params=pltpu.CompilerParams(
                dimension_semantics=("parallel",),
                vmem_limit_bytes=vmem_limit,
            ),
            cost_estimate=cost,
        )(x, pe_hl[None])

    R, C, TR = tiling
    n_row_tiles = R // TR
    block_bytes = TR * C * itemsize
    # 3 operands x 2 pipeline buffers, plus headroom; capped below v7x's 64 MiB VMEM.
    vmem_limit = int(min(60 * 1024 * 1024, max(32 * 1024 * 1024, 8 * block_bytes)))

    x_rc = x.reshape(B, R, C)
    pe_rc = pe_hl.reshape(1, R, C)

    out = pl.pallas_call(
        _add_pe_kernel,
        out_shape=jax.ShapeDtypeStruct((B, R, C), x.dtype),
        grid_spec=pltpu.PrefetchScalarGridSpec(
            num_scalar_prefetch=0,
            # Row-tile axis OUTER so the pe block index only changes on the outer axis:
            # Pallas re-DMAs each pe tile once, then revisits it for all B inner steps.
            grid=(n_row_tiles, B),
            in_specs=[
                pl.BlockSpec((1, TR, C), lambda j, b: (b, j, 0)),   # x
                pl.BlockSpec((1, TR, C), lambda j, b: (0, j, 0)),   # pe (broadcast over b)
            ],
            out_specs=pl.BlockSpec((1, TR, C), lambda j, b: (b, j, 0)),
        ),
        compiler_params=pltpu.CompilerParams(
            dimension_semantics=("parallel", "parallel"),
            vmem_limit_bytes=vmem_limit,
        ),
        cost_estimate=cost,
    )(x_rc, pe_rc)
    return out.reshape(B, H, L)


def positional_encoding_ref(x: jnp.ndarray, pe_hm: jnp.ndarray) -> jnp.ndarray:
    """Pure-JAX reference matching the PyTorch forward (eval-mode dropout)."""
    B, H, L = x.shape
    max_len = pe_hm.shape[1]
    pos_idx = jnp.arange(L) % max_len
    pe_lh = pe_hm.T[pos_idx]                              # (L, H)
    x_lbh = jnp.transpose(x, (2, 0, 1))                   # (L, B, H)
    y = x_lbh + pe_lh[:, None, :]
    return jnp.transpose(y, (1, 2, 0))                    # (B, H, L)


if __name__ == "__main__":
    key = jax.random.PRNGKey(0)

    # Small shapes consistent with the module: batch=2, d_model=32, seq_len=16.
    B, D_MODEL, SEQ = 2, 32, 16
    MAX_LEN = 64  # keep the synthetic buffer small; semantics identical

    x = jax.random.normal(key, (B, D_MODEL, SEQ), dtype=jnp.float32)
    pe = make_pe_table(D_MODEL, MAX_LEN)                  # (d_model, max_len)

    out = positional_encoding_forward(x, pe)
    out = jax.block_until_ready(out)

    ref = positional_encoding_ref(x, pe)
    assert out.shape == (B, D_MODEL, SEQ)
    assert jnp.allclose(out, ref, atol=1e-6, rtol=1e-6), "mismatch vs reference"

    print("KERNEL_OK")
</pallas_src>

<mosaic_0001>
module attributes {stable_mosaic.version = 11 : i64} {
  func.func @_add_pe_kernel(%arg0: i32, %arg1: i32, %arg2: memref<1x1x512xf32, #tpu.memory_space<vmem>>, %arg3: memref<1x1x512xf32, #tpu.memory_space<vmem>>, %arg4: memref<1x1x512xf32, #tpu.memory_space<vmem>>) attributes {dimension_semantics = [#tpu.dimension_semantics<parallel>, #tpu.dimension_semantics<parallel>], iteration_bounds = array<i64: 1, 2>, scalar_prefetch = 0 : i64, scratch_operands = 0 : i64, tpu.core_type = #tpu.core_type<tc>, window_params = [{transform_indices = @transform_0, window_bounds = array<i64: 1, 1, 512>}, {transform_indices = @transform_1, window_bounds = array<i64: 1, 1, 512>}, {transform_indices = @transform_2, window_bounds = array<i64: 1, 1, 512>}]} {
    %c0 = arith.constant 0 : index
    %c0_0 = arith.constant 0 : index
    %c0_1 = arith.constant 0 : index
    %0 = vector.load %arg2[%c0, %c0_0, %c0_1] : memref<1x1x512xf32, #tpu.memory_space<vmem>>, vector<1x1x512xf32>
    %c0_2 = arith.constant 0 : index
    %c0_3 = arith.constant 0 : index
    %c0_4 = arith.constant 0 : index
    %1 = vector.load %arg3[%c0_2, %c0_3, %c0_4] : memref<1x1x512xf32, #tpu.memory_space<vmem>>, vector<1x1x512xf32>
    %2 = arith.addf %0, %1 : vector<1x1x512xf32>
    %c0_5 = arith.constant 0 : index
    %c0_6 = arith.constant 0 : index
    %c0_7 = arith.constant 0 : index
    %3 = vector.load %arg4[%c0_5, %c0_6, %c0_7] : memref<1x1x512xf32, #tpu.memory_space<vmem>>, vector<1x1x512xf32>
    tpu.vector_store %arg4[%c0_5, %c0_6, %c0_7], %2 {strides = array<i32>} : memref<1x1x512xf32, #tpu.memory_space<vmem>>, vector<1x1x512xf32>,
    return
  }
  func.func @transform_0(%arg0: i32, %arg1: i32) -> (i32, i32, i32) {
    %c0_i32 = arith.constant 0 : i32
    %c0_i32_0 = arith.constant 0 : i32
    return %arg1, %arg0, %c0_i32 : i32, i32, i32
  }
  func.func @transform_1(%arg0: i32, %arg1: i32) -> (i32, i32, i32) {
    %c0_i32 = arith.constant 0 : i32
    %c0_i32_0 = arith.constant 0 : i32
    %c0_i32_1 = arith.constant 0 : i32
    return %c0_i32, %arg0, %c0_i32_0 : i32, i32, i32
  }
  func.func @transform_2(%arg0: i32, %arg1: i32) -> (i32, i32, i32) {
    %c0_i32 = arith.constant 0 : i32
    %c0_i32_0 = arith.constant 0 : i32
    return %arg1, %arg0, %c0_i32 : i32, i32, i32
  }
}

</mosaic_0001>

<llo_original>
// kernel: tpu_custom_call.1
$region0: #{tpu_custom_call.1}
  #allocation0 [shape = 'u32[]', space=smem, size = 0x4, offset = 0x4, fixed_abs, tag = 'smem constant byte address 0x4 - core index']
  #allocation1 [shape = 'u32[144,128]{1,0:T(1,128)}', space=vmem, size = 0x12000, scoped, tag = 'internal scratch']
  %s0 = inlined_call_operand.hbm [shape: f32[2,1,512], index: 0, kind: input, shape index: {}]
  %s1 = inlined_call_operand.hbm [shape: f32[1,1,512], index: 1, kind: input, shape index: {}]
  %s2 = inlined_call_operand.hbm [shape: f32[2,1,512], index: 2, kind: output, shape index: {}]
  %s3 = sld [smem:[#allocation0]]
  $region49: #{tpu_custom_call.1} parent=0
    _
  %s5 = ssub.s32 1, %s3
  %s6 = scalar_select 0, %s5, %s3
  $region1: #{tpu_custom_call.1} parent=0
    #allocation2 [shape = 'u8[4096]{0}', space=vmem, size = 0x1000, scoped, tag = 'input window, operand 0']
    #allocation3 [shape = 's32[2]{0}', space=sflag, size = 0x8, scoped, tag = 'scoped memory for tpu_custom_call.1']
    #allocation4 [shape = 's32[2]{0}', space=sflag, size = 0x8, scoped, tag = 'scoped memory for tpu_custom_call.1']
    #allocation5 [shape = 'u8[2048]{0}', space=vmem, size = 0x800, scoped, tag = 'input window, operand 1, single buffered']
    #allocation6 [shape = 's32[1]{0}', space=sflag, size = 0x4, scoped, tag = 'scoped memory for tpu_custom_call.1']
    #allocation7 [shape = 'u8[4096]{0}', space=vmem, size = 0x1000, scoped, tag = 'output window, operand 0']
    %7 = vsyncpa [#allocation3], 0
    %s8 = scalar_lea.sflag [#allocation3], 1
    %9 = vsyncpa %s8, 0
    %10 = vsyncpa [#allocation6], 0
    %11 = vsyncpa [#allocation4], 0
    %s12 = scalar_lea.sflag [#allocation4], 1
    %13 = vsyncpa %s12, 0
    loop: start=0, step=1, limit=4
    $region2: #{tpu_custom_call.1} parent=1 // loop_pre_header
      _
    $region3: #{tpu_custom_call.1} parent=1 // loop_header
      %s15 = sphi 0, %s19
      %p16 = scmp.ge.s32.totalorder %s15, 4
      %s22 = sphi 0, %s34
      %s23 = sphi 0, %s30
      %s24 = sphi 0, %s22
      %s25 = sphi 0, %s23
      %s26 = sphi 0, %s24
      %s27 = sphi 0, %s25
      %s39 = sphi 0, %s41
      %s42 = sphi 0, %s39
      %s43 = sphi 0, %s42
      %s59 = sphi 0, %s43
      %s65 = sphi 0, %s67
      %s68 = sphi 0, %s65
      %s69 = sphi 0, %s68
      %s85 = sphi 0, %s69
      %s93 = sphi 0, %s95
      %s96 = sphi 0, %s93
      %s97 = sphi 0, %s96
      %s113 = sphi 0, %s97
    $region4: #{tpu_custom_call.1} parent=1 // loop_header_branch
      %18 = sbr.rel (%p16) target = $region8
    $region5: #{tpu_custom_call.1} parent=1 // loop_body
      %s20 = ssub.s32 %s15, 1
      %s21 = ssub.s32 %s15, 2
      %s28 = sadd.s32 1, %s23
      %p29 = scmp.ge.s32.totalorder %s28, 2
      %s30 = scalar_select %p29, 0, %s28
      %s31 = sadd.s32 1, %s22
      %s32 = scalar_select %p29, %s31, %s22
      %p33 = scmp.ge.s32.totalorder %s32, 1
      %s34 = scalar_select %p33, 0, %s32
      %s35 = ssub.s32 %s23, %s30
      %s36 = ssub.s32 %s22, %s34
      %s37 = sor.u32 %s35, %s36
      %p38 = scmp.eq.s32.totalorder %s37, 0
      %s40 = sadd.s32 %s39, 1
      %s41 = scalar_select %p38, %s39, %s40
      %p44 = pneg %p38
      %p45 = scmp.eq.s32.totalorder %s15, 1
      %p46 = por %p44, %p45
      %p47 = scmp.ne.s32.totalorder %s39, %s42
      %p48 = scmp.eq.s32.totalorder %s15, 0
      %p49 = por %p47, %p48
      %p50 = scmp.ne.s32.totalorder %s39, %s42
      %p51 = scmp.eq.s32.totalorder %s20, 1
      %p52 = por %p50, %p51
      %p53 = scmp.ne.s32.totalorder %s42, %s43
      %p54 = scmp.eq.s32.totalorder %s20, 0
      %p55 = por %p53, %p54
      %p56 = scmp.ne.s32.totalorder %s42, %s43
      %p57 = scmp.eq.s32.totalorder %s21, 1
      %p58 = por %p56, %p57
      %p60 = scmp.ne.s32.totalorder %s43, %s59
      %p61 = scmp.eq.s32.totalorder %s21, 0
      %p62 = por %p60, %p61
      %s63 = ssub.s32 %s22, %s34
      %p64 = scmp.eq.s32.totalorder %s63, 0
      %s66 = sadd.s32 %s65, 1
      %s67 = scalar_select %p64, %s65, %s66
      %p70 = pneg %p64
      %p71 = scmp.eq.s32.totalorder %s15, 1
      %p72 = por %p70, %p71
      %p73 = scmp.ne.s32.totalorder %s65, %s68
      %p74 = scmp.eq.s32.totalorder %s15, 0
      %p75 = por %p73, %p74
      %p76 = scmp.ne.s32.totalorder %s65, %s68
      %p77 = scmp.eq.s32.totalorder %s20, 1
      %p78 = por %p76, %p77
      %p79 = scmp.ne.s32.totalorder %s68, %s69
      %p80 = scmp.eq.s32.totalorder %s20, 0
      %p81 = por %p79, %p80
      %p82 = scmp.ne.s32.totalorder %s68, %s69
      %p83 = scmp.eq.s32.totalorder %s21, 1
      %p84 = por %p82, %p83
      %p86 = scmp.ne.s32.totalorder %s69, %s85
      %p87 = scmp.eq.s32.totalorder %s21, 0
      %p88 = por %p86, %p87
      %s89 = ssub.s32 %s23, %s30
      %s90 = ssub.s32 %s22, %s34
      %s91 = sor.u32 %s89, %s90
      %p92 = scmp.eq.s32.totalorder %s91, 0
      %s94 = sadd.s32 %s93, 1
      %s95 = scalar_select %p92, %s93, %s94
      %p98 = pneg %p92
      %p99 = scmp.eq.s32.totalorder %s15, 1
      %p100 = por %p98, %p99
      %p101 = scmp.ne.s32.totalorder %s93, %s96
      %p102 = scmp.eq.s32.totalorder %s15, 0
      %p103 = por %p101, %p102
      %p104 = scmp.ne.s32.totalorder %s93, %s96
      %p105 = scmp.eq.s32.totalorder %s20, 1
      %p106 = por %p104, %p105
      %p107 = scmp.ne.s32.totalorder %s96, %s97
      %p108 = scmp.eq.s32.totalorder %s20, 0
      %p109 = por %p107, %p108
      %p110 = scmp.ne.s32.totalorder %s96, %s97
      %p111 = scmp.eq.s32.totalorder %s21, 1
      %p112 = por %p110, %p111
      %p114 = scmp.ne.s32.totalorder %s97, %s113
      %p115 = scmp.eq.s32.totalorder %s21, 0
      %p116 = por %p114, %p115
      %p117 = scmp.le.s32.totalorder 1, %s15
      %p118 = scmp.lt.s32.totalorder %s15, 3
      %p119 = pnand %p117, %p118
      %p120 = pneg %p119
      // Predicated region
      $region9: #{tpu_custom_call.1} parent=5 // pred_check
        _
      $region10: #{tpu_custom_call.1} parent=5 // pred_check_branch
        %122 = sbr.rel (%p119) target = $region12
      $region11: #{tpu_custom_call.1} parent=5 // pred_region
        %s123 = ssub.s32 %s15, 1
        // Predicated region
        $region13: #{tpu_custom_call.1} parent=11 // pred_check
          %p124 = pneg %p81
        $region14: #{tpu_custom_call.1} parent=11 // pred_check_branch
          %126 = sbr.rel (%p124) target = $region16
        $region15: #{tpu_custom_call.1} parent=11 // pred_region
          %s128 = ssub.s32 64, 64
          %129 = vsyncadd [#allocation6], %s128
          %s130 = smul.addr %s24, 4
          %s131 = smul.addr %s130, 16
          %s132 = scalar_lea.hbm %s1, %s131
          %s134 = sshll.u32 [#allocation5], 4
          %s135 = int_to_ptr.vmem [resolvable:$true] %s134
          %137 = dma.hbm_to_vmem [thread:$0]  %s132, 64, %s135, [#allocation6]
        $region16: #{tpu_custom_call.1} parent=11 // pred_fallthru
          _
      $region12: #{tpu_custom_call.1} parent=5 // pred_fallthru
        _
      %p138 = scmp.lt.s32.totalorder %s15, 2
      // Predicated region
      $region17: #{tpu_custom_call.1} parent=5 // pred_check
        %p139 = pneg %p138
      $region18: #{tpu_custom_call.1} parent=5 // pred_check_branch
        %141 = sbr.rel (%p139) target = $region20
      $region19: #{tpu_custom_call.1} parent=5 // pred_region
        // Predicated region
        $region21: #{tpu_custom_call.1} parent=19 // pred_check
          %p142 = pneg %p49
        $region22: #{tpu_custom_call.1} parent=19 // pred_check_branch
          %144 = sbr.rel (%p142) target = $region24
        $region23: #{tpu_custom_call.1} parent=19 // pred_region
          %s145 = sand.u32 %s39, 1
          %s146 = scalar_lea.sflag [#allocation3], %s145
          %s147 = sand.u32 %s39, 1
          %s148 = smul.addr %s147, 4
          %s149 = scalar_lea.vmem [#allocation2], %s148
          %s151 = ssub.s32 64, 64
          %152 = vsyncadd %s146, %s151
          %s153 = smul.addr %s22, 4
          %s154 = smul.addr %s23, 4
          %s155 = sadd.s32 %s153, %s154
          %s156 = smul.addr %s155, 16
          %s157 = scalar_lea.hbm %s0, %s156
          %s159 = sshll.u32 %s149, 4
          %s160 = int_to_ptr.vmem [resolvable:$true] %s159
          %162 = dma.hbm_to_vmem [thread:$0]  %s157, 64, %s160, %s146
        $region24: #{tpu_custom_call.1} parent=19 // pred_fallthru
          _
      $region20: #{tpu_custom_call.1} parent=5 // pred_fallthru
        _
      %p163 = scmp.le.s32.totalorder 1, %s15
      %p164 = scmp.lt.s32.totalorder %s15, 3
      %p165 = pnand %p163, %p164
      %p166 = pneg %p165
      // Predicated region
      $region25: #{tpu_custom_call.1} parent=5 // pred_check
        _
      $region26: #{tpu_custom_call.1} parent=5 // pred_check_branch
        %168 = sbr.rel (%p165) target = $region28
      $region27: #{tpu_custom_call.1} parent=5 // pred_region
        %s169 = ssub.s32 %s15, 1
        %s170 = sand.u32 %s42, 1
        %s171 = scalar_lea.sflag [#allocation3], %s170
        %s172 = sand.u32 %s42, 1
        %s173 = smul.addr %s172, 4
        %s174 = scalar_lea.vmem [#allocation2], %s173
        // Predicated region
        $region29: #{tpu_custom_call.1} parent=27 // pred_check
          %p175 = pneg %p55
        $region30: #{tpu_custom_call.1} parent=27 // pred_check_branch
          %177 = sbr.rel (%p175) target = $region32
        $region31: #{tpu_custom_call.1} parent=27 // pred_region
          %178 = dma.done %s171, 64
        $region32: #{tpu_custom_call.1} parent=27 // pred_fallthru
          _
        // Predicated region
        $region33: #{tpu_custom_call.1} parent=27 // pred_check
          %p179 = pneg %p81
        $region34: #{tpu_custom_call.1} parent=27 // pred_check_branch
          %181 = sbr.rel (%p179) target = $region36
        $region35: #{tpu_custom_call.1} parent=27 // pred_region
          %182 = dma.done [#allocation6], 64
        $region36: #{tpu_custom_call.1} parent=27 // pred_fallthru
          _
        %s183 = sand.u32 %s42, 1
        %s184 = scalar_lea.sflag [#allocation3], %s183
        %s185 = sand.u32 %s42, 1
        %s186 = smul.addr %s185, 4
        %s187 = scalar_lea.vmem [#allocation2], %s186
        %p188 = pneg %p55
        %p189 = pneg %p52
        %p190 = pneg %p81
        %p191 = pneg %p78
        %p192 = pneg %p109
        %p193 = pneg %p106
        %s194 = sand.u32 %s96, 1
        %s195 = scalar_lea.sflag [#allocation4], %s194
        %s196 = sand.u32 %s96, 1
        %s197 = smul.addr %s196, 4
        %s198 = scalar_lea.vmem [#allocation7], %s197
        %v199 = vld [vmem:[%s174] sm:$0xf]
        %v200 = vld [vmem:[#allocation5] sm:$0xf]
        %v201 = vadd.f32 %v199, %v200
        %v202 = vlaneseq
        %vm203 = vcmp.ge.s32.totalorder %v202, 0
        %vm204 = vcmp.lt.s32.totalorder %v202, 512
        %vm205 = vmand %vm203, %vm204
        %206 = vst.msk [vmem:[%s198] sm:$0xf] %vm205, %v201
        %s207 = sand.u32 %s96, 1
        %s208 = scalar_lea.sflag [#allocation4], %s207
        %s209 = sand.u32 %s96, 1
        %s210 = smul.addr %s209, 4
        %s211 = scalar_lea.vmem [#allocation7], %s210
        // Predicated region
        $region37: #{tpu_custom_call.1} parent=27 // pred_check
          %p212 = pneg %p106
        $region38: #{tpu_custom_call.1} parent=27 // pred_check_branch
          %214 = sbr.rel (%p212) target = $region40
        $region39: #{tpu_custom_call.1} parent=27 // pred_region
          %s216 = ssub.s32 64, 64
          %217 = vsyncadd %s208, %s216
          %s218 = smul.addr %s24, 4
          %s219 = smul.addr %s25, 4
          %s220 = sadd.s32 %s218, %s219
          %s221 = smul.addr %s220, 16
          %s222 = scalar_lea.hbm %s2, %s221
          %s224 = sshll.u32 %s211, 4
          %s225 = int_to_ptr.vmem [resolvable:$true] %s224
          %227 = dma.vmem_to_hbm [thread:$0]  %s225, 64, %s222, %s208
        $region40: #{tpu_custom_call.1} parent=27 // pred_fallthru
          _
      $region28: #{tpu_custom_call.1} parent=5 // pred_fallthru
        _
      %p228 = scmp.le.s32.totalorder 2, %s15
      // Predicated region
      $region41: #{tpu_custom_call.1} parent=5 // pred_check
        %p229 = pneg %p228
      $region42: #{tpu_custom_call.1} parent=5 // pred_check_branch
        %231 = sbr.rel (%p229) target = $region44
      $region43: #{tpu_custom_call.1} parent=5 // pred_region
        %s232 = ssub.s32 %s15, 2
        // Predicated region
        $region45: #{tpu_custom_call.1} parent=43 // pred_check
          %p233 = pneg %p112
        $region46: #{tpu_custom_call.1} parent=43 // pred_check_branch
          %235 = sbr.rel (%p233) target = $region48
        $region47: #{tpu_custom_call.1} parent=43 // pred_region
          %s236 = sand.u32 %s97, 1
          %s237 = scalar_lea.sflag [#allocation4], %s236
          %s238 = sand.u32 %s97, 1
          %s239 = smul.addr %s238, 4
          %s240 = scalar_lea.vmem [#allocation7], %s239
          %241 = dma.done %s237, 64
        $region48: #{tpu_custom_call.1} parent=43 // pred_fallthru
          _
      $region44: #{tpu_custom_call.1} parent=5 // pred_fallthru
        _
    $region6: #{tpu_custom_call.1} parent=1 // loop_footer
      %s19 = sadd.s32 1, %s15
    $region7: #{tpu_custom_call.1} parent=1 // loop_footer_branch
      %14 = sbr.rel target = $region3
    $region8: #{tpu_custom_call.1} parent=1 // loop_exit
      _
    %242 = vsyncpa [#allocation3], 1
    %s243 = scalar_lea.sflag [#allocation3], 1
    %244 = vsyncpa %s243, 1
    %245 = vsyncpa [#allocation6], 1
    %246 = vsyncpa [#allocation4], 1
    %s247 = scalar_lea.sflag [#allocation4], 1
    %248 = vsyncpa %s247, 1

</llo_original>
